<compile_context>
chip_gen: v7x
topology: tpu7x:2x2x1
jax: 0.10.0
libtpu: 0.0.40
codegen_flags: <defaults>
</compile_context>

<pallas_src>
import functools

import jax
import jax.numpy as jnp
from jax import lax
from jax.experimental import pallas as pl
from jax.experimental.pallas import tpu as pltpu

_LANE = 128
_MiB = 1 << 20


def _cdiv(a, b):
    return -(-a // b)


def _round_up(a, b):
    return _cdiv(a, b) * b


def _sublane(itemsize):
    # Native sublane tile: 8 for 4-byte, 16 for 2-byte, 32 for 1-byte dtypes.
    return max(8, 32 // max(1, itemsize))


def _vmem_budgets():
    """(per-input tile budget bytes, vmem_limit cap bytes), generation-aware."""
    try:
        info = pltpu.get_tpu_info()
        vmem_cap = int(getattr(info, "vmem_capacity_bytes", 64 * _MiB))
    except Exception:  # introspection unavailable -> conservative defaults
        vmem_cap = 64 * _MiB
    if vmem_cap <= 64 * _MiB:          # v7x-like: 64 MiB physical VMEM per TC
        return 4 * _MiB, 48 * _MiB
    return 8 * _MiB, 80 * _MiB         # v5e / v6e: 128 MiB physical VMEM


def _choose_tiles(n_rows, n_cols, itemsize, sub, budget_elems):
    """Pick (br, bc, g_rows): block shape + inner row-group size.

    br is a multiple of the dtype sublane tile (or the full tiny row extent);
    bc is the full column extent or a large multiple of 128.  Non-dividing
    extents are handled by partial last blocks + in-kernel masking.
    """
    acc_col_cap = max(_LANE, (2 * _MiB // 4) // sub)   # keep f32 acc <= ~2 MiB

    if n_rows < sub:
        # Tiny row extent: one full-dim row block, single group.
        bc_cap = min(n_cols, max(_LANE, budget_elems // max(1, n_rows)),
                     acc_col_cap)
        bc = n_cols if bc_cap >= n_cols else max(_LANE,
                                                 (bc_cap // _LANE) * _LANE)
        return n_rows, bc, n_rows

    # Column tile: prefer contiguous full columns (best HBM efficiency).
    bc_cap = min(n_cols, max(_LANE, budget_elems // sub), acc_col_cap)
    bc = n_cols if bc_cap >= n_cols else max(_LANE, (bc_cap // _LANE) * _LANE)

    # Row tile: multiple of sub, never exceeding the whole-row multiple of
    # sub; capped so the "parallel" row axis gets >= 2 blocks when rows permit
    # (keeps both TensorCores busy on v7x; neutral on single-core chips).
    max_br = max(sub, (budget_elems // bc) // sub * sub)
    br = min(max_br, (n_rows // sub) * sub)
    if n_rows >= 2 * sub:
        br = min(br, _round_up(_cdiv(n_rows, 2), sub))
    br = max(sub, (br // sub) * sub)

    # Inner row-group size: a multiple of sub that divides br, large enough to
    # amortize loop overhead but keeping the live f32 group temp small
    # (a fraction of the tile budget, <= 512 KiB).
    group_elem_cap = max(sub * _LANE, min(128 * 1024, budget_elems // 4))
    max_units = max(1, group_elem_cap // (sub * bc))
    units_total = br // sub
    k = min(units_total, max_units)
    while units_total % k:
        k -= 1
    return br, bc, sub * k


def _ssd_kernel(x_ref, t_ref, o_ref, acc_ref, *, br, bc, g_rows, groups,
                n_rows, n_cols, mask_rows, mask_cols, low_precision_diff):
    """Per-row-block sum of squared differences.

    Grid: (row_blocks [parallel], col_blocks [arbitrary / carried reduction]).
    acc_ref: (g_rows, bc) f32 scratch carried across the column axis.
    o_ref:   (1, 128) lane-dense partial for this row block (unscaled).
    """
    i = pl.program_id(0)
    j = pl.program_id(1)

    @pl.when(j == 0)
    def _():
        acc_ref[...] = jnp.zeros_like(acc_ref)

    col_mask = None
    if mask_cols:
        col_mask = (j * bc
                    + lax.broadcasted_iota(jnp.int32, (1, bc), 1)) < n_cols

    def accumulate(off):
        # Stream one sublane-aligned row group: the only live f32 temp is
        # (g_rows, bc); the full-tile f32 d**2 is never materialized.
        xg = x_ref[pl.ds(off, g_rows), :]
        tg = t_ref[pl.ds(off, g_rows), :]
        if low_precision_diff and xg.dtype != jnp.float32:
            # Opt-in: native-dtype subtract (fewer VPU ops on v6e/v7x bf16),
            # slightly different rounding.
            d = (xg - tg).astype(jnp.float32)
        else:
            d = xg.astype(jnp.float32) - tg.astype(jnp.float32)
        d2 = d * d
        mask = col_mask
        if mask_rows:
            rmask = (i * br + off
                     + lax.broadcasted_iota(jnp.int32, (g_rows, 1), 0)) < n_rows
            mask = rmask if mask is None else (rmask & mask)
        if mask is not None:
            d2 = jnp.where(mask, d2, 0.0)
        acc_ref[...] += d2

    if groups == 1:
        accumulate(0)
    else:
        def body(g, carry):
            accumulate(pl.multiple_of(g * g_rows, g_rows))
            return carry
        lax.fori_loop(0, groups, body, 0, unroll=min(groups, 8))

    @pl.when(j == pl.num_programs(1) - 1)
    def _():
        partial = jnp.sum(acc_ref[...])   # single cross-lane/sublane reduce
        o_ref[...] = jnp.full((1, _LANE), partial, dtype=jnp.float32)


def content_loss(x, target, *, tile_budget_bytes=None, low_precision_diff=False):
    """1/(c*h*w) * sum((x - target)^2), computed with a Pallas TPU kernel."""
    assert x.shape == target.shape, "x and target must have identical shapes"
    b, c, h, w = x.shape
    scale = 1.0 / (c * h * w)

    itemsize = jnp.dtype(x.dtype).itemsize
    sub = _sublane(itemsize)
    default_budget, vmem_cap = _vmem_budgets()
    if tile_budget_bytes is None:
        tile_budget_bytes = default_budget
    budget_elems = max(sub * _LANE, tile_budget_bytes // itemsize)

    n_rows, n_cols = b * c, h * w
    x2 = x.reshape(n_rows, n_cols)          # contiguous view, no HBM copy
    t2 = target.reshape(n_rows, n_cols)

    br, bc, g_rows = _choose_tiles(n_rows, n_cols, itemsize, sub, budget_elems)
    groups = br // g_rows
    mask_rows = (n_rows % br) != 0
    mask_cols = (n_cols % bc) != 0
    n_row_blocks = _cdiv(n_rows, br)
    n_col_blocks = _cdiv(n_cols, bc)

    # Real VMEM footprint: 2 inputs x 2 pipeline buffers x tile + f32 acc +
    # in-flight f32 group temps + slack; floor 32 MiB (v5e scoped default is
    # 16 MiB), cap per generation (48 MiB on 64-MiB-VMEM chips).
    tile_bytes = br * bc * itemsize
    acc_bytes = g_rows * bc * 4
    temp_bytes = 4 * g_rows * bc * 4
    vmem_limit = int(min(vmem_cap,
                         max(32 * _MiB,
                             4 * tile_bytes + acc_bytes + temp_bytes + 4 * _MiB)))

    n_elems = n_rows * n_cols
    out = pl.pallas_call(
        functools.partial(
            _ssd_kernel, br=br, bc=bc, g_rows=g_rows, groups=groups,
            n_rows=n_rows, n_cols=n_cols, mask_rows=mask_rows,
            mask_cols=mask_cols, low_precision_diff=low_precision_diff),
        out_shape=jax.ShapeDtypeStruct((1, n_row_blocks * _LANE), jnp.float32),
        grid_spec=pltpu.PrefetchScalarGridSpec(
            num_scalar_prefetch=0,
            grid=(n_row_blocks, n_col_blocks),
            in_specs=[
                pl.BlockSpec((br, bc), lambda i, j: (i, j)),
                pl.BlockSpec((br, bc), lambda i, j: (i, j)),
            ],
            out_specs=pl.BlockSpec((1, _LANE), lambda i, j: (0, i)),
            scratch_shapes=[pltpu.VMEM((g_rows, bc), jnp.float32)],
        ),
        compiler_params=pltpu.CompilerParams(
            dimension_semantics=("parallel", "arbitrary"),
            vmem_limit_bytes=vmem_limit,
        ),
        cost_estimate=pl.CostEstimate(
            flops=3 * n_elems,
            transcendentals=0,
            bytes_accessed=2 * n_elems * itemsize + n_row_blocks * _LANE * 4,
        ),
    )(x2, t2)

    partials = out.reshape(n_row_blocks, _LANE)[:, 0]
    return jnp.sum(partials) * jnp.float32(scale)


def _ref_loss(x, target):
    b, c, h, w = x.shape
    xf = x.astype(jnp.float32)
    tf = target.astype(jnp.float32)
    return (1.0 / (c * h * w)) * jnp.sum((xf - tf) ** 2)


if __name__ == "__main__":
    key = jax.random.PRNGKey(0)
    keys = jax.random.split(key, 10)

    # 1) Primary shape from the module: clean (dividing) tiling path.
    b, c, h, w = 2, 4, 16, 16
    x = jax.random.normal(keys[0], (b, c, h, w), dtype=jnp.float32)
    t = jax.random.normal(keys[1], (b, c, h, w), dtype=jnp.float32)
    loss = jax.block_until_ready(content_loss(x, t))
    assert jnp.allclose(loss, _ref_loss(x, t), rtol=1e-5, atol=1e-5)

    # 2) Awkward shape: partial last row block handled by in-kernel masking
    #    (no jnp.pad HBM pass).
    x2 = jax.random.normal(keys[2], (2, 5, 12, 15), dtype=jnp.float32)
    t2 = jax.random.normal(keys[3], (2, 5, 12, 15), dtype=jnp.float32)
    loss2 = jax.block_until_ready(content_loss(x2, t2))
    assert jnp.allclose(loss2, _ref_loss(x2, t2), rtol=1e-5, atol=1e-5)

    # 3) Small tile budget: exercises the inner fori_loop row-group streaming
    #    and the >=2-row-block (parallel) split.
    x3 = jax.random.normal(keys[4], (2, 16, 32, 32), dtype=jnp.float32)
    t3 = jax.random.normal(keys[5], (2, 16, 32, 32), dtype=jnp.float32)
    loss3 = jax.block_until_ready(content_loss(x3, t3, tile_budget_bytes=64 << 10))
    assert jnp.allclose(loss3, _ref_loss(x3, t3), rtol=1e-5, atol=1e-5)

    # 4) Column tiling + column masking + carried column reduction.
    x4 = jax.random.normal(keys[6], (2, 8, 40, 60), dtype=jnp.float32)
    t4 = jax.random.normal(keys[7], (2, 8, 40, 60), dtype=jnp.float32)
    loss4 = jax.block_until_ready(content_loss(x4, t4, tile_budget_bytes=64 << 10))
    assert jnp.allclose(loss4, _ref_loss(x4, t4), rtol=1e-5, atol=1e-5)

    # 5) bf16 inputs: native-dtype streaming, f32 accumulation in-kernel.
    x5 = jax.random.normal(keys[8], (2, 8, 16, 16), dtype=jnp.bfloat16)
    t5 = jax.random.normal(keys[9], (2, 8, 16, 16), dtype=jnp.bfloat16)
    loss5 = jax.block_until_ready(content_loss(x5, t5))
    assert jnp.allclose(loss5, _ref_loss(x5, t5), rtol=1e-4, atol=1e-4)

    print("KERNEL_OK")
</pallas_src>

<mosaic_0001>
module attributes {stable_mosaic.version = 11 : i64} {
  func.func @_ssd_kernel(%arg0: i32, %arg1: i32, %arg2: memref<8x256xf32, #tpu.memory_space<vmem>>, %arg3: memref<8x256xf32, #tpu.memory_space<vmem>>, %arg4: memref<1x128xf32, #tpu.memory_space<vmem>>, %arg5: memref<8x256xf32, #tpu.memory_space<vmem>>) attributes {dimension_semantics = [#tpu.dimension_semantics<parallel>, #tpu.dimension_semantics<arbitrary>], iteration_bounds = array<i64: 1, 1>, scalar_prefetch = 0 : i64, scratch_operands = 1 : i64, tpu.core_type = #tpu.core_type<tc>, window_params = [{transform_indices = @transform_0, window_bounds = array<i64: 8, 256>}, {transform_indices = @transform_1, window_bounds = array<i64: 8, 256>}, {transform_indices = @transform_2, window_bounds = array<i64: 1, 128>}]} {
    %c0_i32 = arith.constant 0 : i32
    %0 = arith.cmpi eq, %arg1, %c0_i32 : i32
    %1 = arith.extui %0 : i1 to i32
    %c0_i32_0 = arith.constant 0 : i32
    %2 = arith.cmpi ne, %1, %c0_i32_0 : i32
    scf.if %2 {
      %cst = arith.constant 0.000000e+00 : f32
      %13 = vector.broadcast %cst : f32 to vector<8x256xf32>
      %c0_10 = arith.constant 0 : index
      %c0_11 = arith.constant 0 : index
      %14 = vector.load %arg5[%c0_10, %c0_11] : memref<8x256xf32, #tpu.memory_space<vmem>>, vector<8x256xf32>
      tpu.vector_store %arg5[%c0_10, %c0_11], %13 {strides = array<i32>} : memref<8x256xf32, #tpu.memory_space<vmem>>, vector<8x256xf32>,
    } else {
    }
    %c0 = arith.constant 0 : index
    %c0_1 = arith.constant 0 : index
    %3 = vector.load %arg2[%c0, %c0_1] : memref<8x256xf32, #tpu.memory_space<vmem>>, vector<8x256xf32>
    %c0_2 = arith.constant 0 : index
    %c0_3 = arith.constant 0 : index
    %4 = vector.load %arg3[%c0_2, %c0_3] : memref<8x256xf32, #tpu.memory_space<vmem>>, vector<8x256xf32>
    %5 = arith.subf %3, %4 : vector<8x256xf32>
    %6 = arith.mulf %5, %5 : vector<8x256xf32>
    %c0_4 = arith.constant 0 : index
    %c0_5 = arith.constant 0 : index
    %7 = vector.load %arg5[%c0_4, %c0_5] : memref<8x256xf32, #tpu.memory_space<vmem>>, vector<8x256xf32>
    %8 = arith.addf %7, %6 : vector<8x256xf32>
    %c0_6 = arith.constant 0 : index
    %c0_7 = arith.constant 0 : index
    %9 = vector.load %arg5[%c0_6, %c0_7] : memref<8x256xf32, #tpu.memory_space<vmem>>, vector<8x256xf32>
    tpu.vector_store %arg5[%c0_6, %c0_7], %8 {strides = array<i32>} : memref<8x256xf32, #tpu.memory_space<vmem>>, vector<8x256xf32>,
    %c0_i32_8 = arith.constant 0 : i32
    %10 = arith.cmpi eq, %arg1, %c0_i32_8 : i32
    %11 = arith.extui %10 : i1 to i32
    %c0_i32_9 = arith.constant 0 : i32
    %12 = arith.cmpi ne, %11, %c0_i32_9 : i32
    scf.if %12 {
      %c0_10 = arith.constant 0 : index
      %c0_11 = arith.constant 0 : index
      %13 = vector.load %arg5[%c0_10, %c0_11] : memref<8x256xf32, #tpu.memory_space<vmem>>, vector<8x256xf32>
      %14 = vector.shape_cast %13 : vector<8x256xf32> to vector<1x8x256xf32>
      %cst = arith.constant dense<0.000000e+00> : vector<1xf32>
      %15 = vector.multi_reduction <add>, %14, %cst [1, 2] : vector<1x8x256xf32> to vector<1xf32>
      %16 = vector.shape_cast %15 : vector<1xf32> to vector<1x1x1xf32>
      %17 = vector.extract %16[0, 0, 0] : f32 from vector<1x1x1xf32>
      %18 = vector.broadcast %17 : f32 to vector<1x128xf32>
      %c0_12 = arith.constant 0 : index
      %c0_13 = arith.constant 0 : index
      %19 = vector.load %arg4[%c0_12, %c0_13] : memref<1x128xf32, #tpu.memory_space<vmem>>, vector<1x128xf32>
      tpu.vector_store %arg4[%c0_12, %c0_13], %18 {strides = array<i32>} : memref<1x128xf32, #tpu.memory_space<vmem>>, vector<1x128xf32>,
    } else {
    }
    return
  }
  func.func @transform_0(%arg0: i32, %arg1: i32) -> (i32, i32) {
    %c0_i32 = arith.constant 0 : i32
    return %arg0, %arg1 : i32, i32
  }
  func.func @transform_1(%arg0: i32, %arg1: i32) -> (i32, i32) {
    %c0_i32 = arith.constant 0 : i32
    return %arg0, %arg1 : i32, i32
  }
  func.func @transform_2(%arg0: i32, %arg1: i32) -> (i32, i32) {
    %c0_i32 = arith.constant 0 : i32
    %c0_i32_0 = arith.constant 0 : i32
    return %c0_i32, %arg0 : i32, i32
  }
}

</mosaic_0001>

<llo_original>
// kernel: tpu_custom_call.1
$region0: #{tpu_custom_call.1}
  #allocation0 [shape = 'u32[]', space=smem, size = 0x4, offset = 0x4, fixed_abs, tag = 'smem constant byte address 0x4 - core index']
  #allocation1 [shape = 'u32[144,128]{1,0:T(1,128)}', space=vmem, size = 0x12000, scoped, tag = 'internal scratch']
  #allocation2 [shape = 'f32[8,256]{1,0:T(8,128)}', space=vmem, size = 0x2000, scoped, tag = 'scratch operand']
  %s0 = inlined_call_operand.hbm [shape: f32[8,256], index: 0, kind: input, shape index: {}]
  %s1 = inlined_call_operand.hbm [shape: f32[8,256], index: 1, kind: input, shape index: {}]
  %s2 = inlined_call_operand.hbm [shape: f32[1,128], index: 2, kind: output, shape index: {}]
  %s3 = sld [smem:[#allocation0]]
  $region34: #{tpu_custom_call.1} parent=0
    _
  %s5 = ssub.s32 1, %s3
  %s6 = scalar_select 0, %s5, %s3
  $region1: #{tpu_custom_call.1} parent=0
    #allocation3 [shape = 'u8[8192]{0}', space=vmem, size = 0x2000, scoped, tag = 'input window, operand 0, single buffered']
    #allocation4 [shape = 's32[1]{0}', space=sflag, size = 0x4, scoped, tag = 'scoped memory for tpu_custom_call.1']
    #allocation5 [shape = 's32[1]{0}', space=sflag, size = 0x4, scoped, tag = 'scoped memory for tpu_custom_call.1']
    #allocation6 [shape = 'u8[8192]{0}', space=vmem, size = 0x2000, scoped, tag = 'input window, operand 1, single buffered']
    #allocation7 [shape = 's32[1]{0}', space=sflag, size = 0x4, scoped, tag = 'scoped memory for tpu_custom_call.1']
    #allocation8 [shape = 'u8[512]{0}', space=vmem, size = 0x400, scoped, tag = 'output window, operand 0, single buffered']
    %7 = vsyncpa [#allocation4], 0
    %8 = vsyncpa [#allocation7], 0
    %9 = vsyncpa [#allocation5], 0
    // Predicated region
    $region2: #{tpu_custom_call.1} parent=1 // pred_check
      _
    $region3: #{tpu_custom_call.1} parent=1 // pred_check_branch
      %11 = sbr.rel (0) target = $region5
    $region4: #{tpu_custom_call.1} parent=1 // pred_region
      %s13 = ssub.s32 256, 256
      %14 = vsyncadd [#allocation4], %s13
      %s16 = sshll.u32 [#allocation3], 4
      %s17 = int_to_ptr.vmem [resolvable:$true] %s16
      %19 = dma.hbm_to_vmem [thread:$0]  %s0, 256, %s17, [#allocation4]
    $region5: #{tpu_custom_call.1} parent=1 // pred_fallthru
      _
    // Predicated region
    $region6: #{tpu_custom_call.1} parent=1 // pred_check
      _
    $region7: #{tpu_custom_call.1} parent=1 // pred_check_branch
      %21 = sbr.rel (0) target = $region9
    $region8: #{tpu_custom_call.1} parent=1 // pred_region
      %s23 = ssub.s32 256, 256
      %24 = vsyncadd [#allocation7], %s23
      %s26 = sshll.u32 [#allocation6], 4
      %s27 = int_to_ptr.vmem [resolvable:$true] %s26
      %29 = dma.hbm_to_vmem [thread:$0]  %s1, 256, %s27, [#allocation7]
    $region9: #{tpu_custom_call.1} parent=1 // pred_fallthru
      _
    // Predicated region
    $region10: #{tpu_custom_call.1} parent=1 // pred_check
      _
    $region11: #{tpu_custom_call.1} parent=1 // pred_check_branch
      %31 = sbr.rel (0) target = $region13
    $region12: #{tpu_custom_call.1} parent=1 // pred_region
      %32 = dma.done [#allocation4], 256
    $region13: #{tpu_custom_call.1} parent=1 // pred_fallthru
      _
    // Predicated region
    $region14: #{tpu_custom_call.1} parent=1 // pred_check
      _
    $region15: #{tpu_custom_call.1} parent=1 // pred_check_branch
      %34 = sbr.rel (0) target = $region17
    $region16: #{tpu_custom_call.1} parent=1 // pred_region
      %35 = dma.done [#allocation7], 256
    $region17: #{tpu_custom_call.1} parent=1 // pred_fallthru
      _
    %p36 = scmp.eq.s32.totalorder 0, 0
    // Predicated region
    $region18: #{tpu_custom_call.1} parent=1 // pred_check
      %p37 = pneg %p36
    $region19: #{tpu_custom_call.1} parent=1 // pred_check_branch
      %39 = sbr.rel (%p37) target = $region21
    $region20: #{tpu_custom_call.1} parent=1 // pred_region
      %40 = vst [vmem:[#allocation2] sm:$0xff] 0.0
      %41 = vst [vmem:[#allocation2 + $0x8] sm:$0xff] 0.0
    $region21: #{tpu_custom_call.1} parent=1 // pred_fallthru
      _
    %v42 = vld [vmem:[#allocation3] sm:$0xff]
    %v43 = vld [vmem:[#allocation3 + $0x8] sm:$0xff]
    %v44 = vld [vmem:[#allocation6] sm:$0xff]
    %v45 = vld [vmem:[#allocation6 + $0x8] sm:$0xff]
    %v46 = vsub.f32 %v42, %v44
    %v47 = vsub.f32 %v43, %v45
    %v48 = vmul.f32 %v46, %v46
    %v49 = vmul.f32 %v47, %v47
    %v50 = vld [vmem:[#allocation2] sm:$0xff]
    %v51 = vld [vmem:[#allocation2 + $0x8] sm:$0xff]
    %v52 = vadd.f32 %v50, %v48
    %v53 = vadd.f32 %v51, %v49
    %54 = vst [vmem:[#allocation2] sm:$0xff] %v52
    %55 = vst [vmem:[#allocation2 + $0x8] sm:$0xff] %v53
    // Predicated region
    $region22: #{tpu_custom_call.1} parent=1 // pred_check
      %p56 = pneg %p36
    $region23: #{tpu_custom_call.1} parent=1 // pred_check_branch
      %58 = sbr.rel (%p56) target = $region25
    $region24: #{tpu_custom_call.1} parent=1 // pred_region
      %v59 = vld [vmem:[#allocation2] sm:$0xff]
      %v60 = vld [vmem:[#allocation2 + $0x8] sm:$0xff]
      %v61 = vadd.f32 %v59, %v60
      %62 = vadd.xlane.f32.xlu0 %v61
      %v63 = vpop.xlane.xlu0 %62
      %v64 = vrot.slane %v63, 4
      %v65 = vadd.f32 %v63, %v64
      %v66 = vrot.slane %v65, 2
      %v67 = vadd.f32 %v65, %v66
      %v68 = vrot.slane %v67, 1
      %v69 = vadd.f32 %v67, %v68
      %s70 = vtos %v69
      %v71 = vstv %s70
      %72 = vst [vmem:[#allocation8] sm:$0x1] %v71
    $region25: #{tpu_custom_call.1} parent=1 // pred_fallthru
      _
    // Predicated region
    $region26: #{tpu_custom_call.1} parent=1 // pred_check
      _
    $region27: #{tpu_custom_call.1} parent=1 // pred_check_branch
      %74 = sbr.rel (0) target = $region29
    $region28: #{tpu_custom_call.1} parent=1 // pred_region
      %s76 = ssub.s32 16, 16
      %77 = vsyncadd [#allocation5], %s76
      %s79 = sshll.u32 [#allocation8], 4
      %s80 = int_to_ptr.vmem [resolvable:$true] %s79
      %82 = dma.vmem_to_hbm [thread:$0]  %s80, 16, %s2, [#allocation5]
    $region29: #{tpu_custom_call.1} parent=1 // pred_fallthru
      _
    // Predicated region
    $region30: #{tpu_custom_call.1} parent=1 // pred_check
      _
    $region31: #{tpu_custom_call.1} parent=1 // pred_check_branch
      %84 = sbr.rel (0) target = $region33
    $region32: #{tpu_custom_call.1} parent=1 // pred_region
      %85 = dma.done [#allocation5], 16
    $region33: #{tpu_custom_call.1} parent=1 // pred_fallthru
      _
    %86 = vsyncpa [#allocation4], 1
    %87 = vsyncpa [#allocation7], 1
    %88 = vsyncpa [#allocation5], 1

</llo_original>
